<compile_context>
chip_gen: v5e
topology: v5e:2x2
jax: 0.10.0
libtpu: 0.0.40
codegen_flags: <defaults>
</compile_context>

<pallas_src>
import functools

import jax
import jax.numpy as jnp
from jax.experimental import pallas as pl
from jax.experimental.pallas import tpu as pltpu


def _mlm_kernel(x_ref, w_ref, b_ref, o_ref, m_scr, l_scr):
    # x_ref: (tm, H) bf16   w_ref: (H, tv) bf16   b_ref: (1, tv) f32
    # o_ref: (tm, tv)       m_scr/l_scr: (tm, 1) f32 running max / sum-of-exp
    p = pl.program_id(1)   # phase: 0 = reduce, 1 = write
    j = pl.program_id(2)   # vocab tile

    @pl.when((p == 0) & (j == 0))
    def _():
        m_scr[...] = jnp.full_like(m_scr, -jnp.inf)
        l_scr[...] = jnp.zeros_like(l_scr)

    # MXU matmul in bf16, f32 accumulation; bias add in f32.
    logits = (
        jnp.dot(x_ref[...], w_ref[...], preferred_element_type=jnp.float32)
        + b_ref[...]
    )

    @pl.when(p == 0)
    def _():
        m_prev = m_scr[...]
        m_new = jnp.maximum(m_prev, jnp.max(logits, axis=-1, keepdims=True))
        l_scr[...] = (
            l_scr[...] * jnp.exp(m_prev - m_new)
            + jnp.sum(jnp.exp(logits - m_new), axis=-1, keepdims=True)
        )
        m_scr[...] = m_new

    @pl.when(p == 1)
    def _():
        lse = m_scr[...] + jnp.log(l_scr[...])
        o_ref[...] = (logits - lse).astype(o_ref.dtype)


def _round_up(x, m):
    return (x + m - 1) // m * m


@functools.partial(jax.jit, static_argnames=("tm", "tv", "out_dtype"))
def masked_language_model(hidden, weight, bias, *, tm=256, tv=512, out_dtype=None):
    """Forward of MaskedLanguageModel.

    hidden: [B, S, H]
    weight: [V, H]  (PyTorch nn.Linear layout)
    bias:   [V]
    returns: [B, S, V] log-probabilities (dtype = out_dtype or hidden.dtype)
    """
    B, S, H = hidden.shape
    V = weight.shape[0]
    M = B * S
    out_dtype = hidden.dtype if out_dtype is None else out_dtype

    # Clamp tiles for small problems; keep sublane (8) / lane (128) alignment.
    tm_eff = min(tm, _round_up(M, 8))
    tv_eff = min(tv, _round_up(V, 128))
    M_pad = _round_up(M, tm_eff)
    V_pad = _round_up(V, tv_eff)

    x = hidden.reshape(M, H)
    if M_pad != M:
        x = jnp.pad(x, ((0, M_pad - M), (0, 0)))
    w_t = weight.T                                   # (H, V)
    b = bias.astype(jnp.float32)
    if V_pad != V:
        w_t = jnp.pad(w_t, ((0, 0), (0, V_pad - V)))
        # Padded vocab columns must not affect the softmax normalizer.
        b = jnp.pad(b, (0, V_pad - V), constant_values=-1e30)

    # bf16 inputs for the MXU; accumulation stays f32 inside the kernel.
    x_bf = x.astype(jnp.bfloat16)
    w_bf = w_t.astype(jnp.bfloat16)
    b2 = b.reshape(1, V_pad)

    n_m = M_pad // tm_eff
    n_v = V_pad // tv_eff
    grid = (n_m, 2, n_v)   # (row tiles, phase, vocab tiles)

    out_bytes = jnp.dtype(out_dtype).itemsize
    vmem_bytes = (
        2 * tm_eff * H * 2            # x tile, bf16, double-buffered
        + 2 * H * tv_eff * 2          # W tile, bf16, double-buffered
        + 2 * 8 * tv_eff * 4          # bias tile (sublane-padded), f32
        + 2 * tm_eff * tv_eff * out_bytes  # out tile, double-buffered
        + 2 * tm_eff * 128 * 4        # (tm, 1) scratches, lane-padded
    )
    vmem_limit = min(max(int(vmem_bytes * 1.5) + (4 << 20), 16 << 20), 64 << 20)

    out = pl.pallas_call(
        _mlm_kernel,
        out_shape=jax.ShapeDtypeStruct((M_pad, V_pad), out_dtype),
        grid_spec=pltpu.PrefetchScalarGridSpec(
            num_scalar_prefetch=0,
            grid=grid,
            in_specs=[
                pl.BlockSpec((tm_eff, H), lambda i, p, j: (i, 0)),     # x rows
                pl.BlockSpec((H, tv_eff), lambda i, p, j: (0, j)),     # W tile
                pl.BlockSpec((1, tv_eff), lambda i, p, j: (0, j)),     # bias tile
            ],
            # Phase 0 parks on block (i, 0) and never writes it, so no stale
            # data reaches HBM; phase 1 visits (i, j) and writes each tile once.
            out_specs=pl.BlockSpec((tm_eff, tv_eff), lambda i, p, j: (i, j * p)),
            scratch_shapes=[
                pltpu.VMEM((tm_eff, 1), jnp.float32),   # running max
                pltpu.VMEM((tm_eff, 1), jnp.float32),   # running sum of exp
            ],
        ),
        compiler_params=pltpu.CompilerParams(
            dimension_semantics=("parallel", "arbitrary", "arbitrary"),
            vmem_limit_bytes=vmem_limit,
        ),
    )(x_bf, w_bf, b2)

    return out[:M, :V].reshape(B, S, V)


if __name__ == "__main__":
    # Small shapes consistent with the module: hidden=32, vocab=128.
    B, S, H, V = 2, 8, 32, 128

    key = jax.random.PRNGKey(0)
    k_x, k_w, k_b = jax.random.split(key, 3)

    # Deterministic synthetic parameters (PyTorch nn.Linear shapes: W=[V,H], b=[V]).
    bound = 1.0 / (H ** 0.5)
    weight = jax.random.uniform(k_w, (V, H), jnp.float32, -bound, bound)
    bias = jax.random.uniform(k_b, (V,), jnp.float32, -bound, bound)

    hidden = jax.random.normal(k_x, (B, S, H), jnp.float32)

    out = masked_language_model(hidden, weight, bias)
    out = jax.block_until_ready(out)
    assert out.shape == (B, S, V)

    # Reference 1: same bf16 input rounding as the kernel (tight check).
    x_bf = hidden.astype(jnp.bfloat16).astype(jnp.float32)
    w_bf = weight.astype(jnp.bfloat16).astype(jnp.float32)
    ref_bf = jax.nn.log_softmax(x_bf @ w_bf.T + bias, axis=-1)
    assert jnp.max(jnp.abs(out - ref_bf)) < 1e-3

    # Reference 2: full f32 module semantics (loose check covering bf16 cast).
    ref_f32 = jax.nn.log_softmax(hidden @ weight.T + bias, axis=-1)
    assert jnp.max(jnp.abs(out - ref_f32)) < 2e-2

    print("KERNEL_OK")
</pallas_src>

<mosaic_0001>
module attributes {stable_mosaic.version = 11 : i64} {
  func.func @_mlm_kernel(%arg0: i32, %arg1: i32, %arg2: i32, %arg3: memref<16x32xbf16, #tpu.memory_space<vmem>>, %arg4: memref<32x128xbf16, #tpu.memory_space<vmem>>, %arg5: memref<1x128xf32, #tpu.memory_space<vmem>>, %arg6: memref<16x128xf32, #tpu.memory_space<vmem>>, %arg7: memref<16x1xf32, #tpu.memory_space<vmem>>, %arg8: memref<16x1xf32, #tpu.memory_space<vmem>>) attributes {dimension_semantics = [#tpu.dimension_semantics<parallel>, #tpu.dimension_semantics<arbitrary>, #tpu.dimension_semantics<arbitrary>], iteration_bounds = array<i64: 1, 2, 1>, scalar_prefetch = 0 : i64, scratch_operands = 2 : i64, tpu.core_type = #tpu.core_type<tc>, window_params = [{transform_indices = @transform_0, window_bounds = array<i64: 16, 32>}, {transform_indices = @transform_1, window_bounds = array<i64: 32, 128>}, {transform_indices = @transform_2, window_bounds = array<i64: 1, 128>}, {transform_indices = @transform_3, window_bounds = array<i64: 16, 128>}]} {
    %c0_i32 = arith.constant 0 : i32
    %0 = arith.cmpi eq, %arg1, %c0_i32 : i32
    %c0_i32_0 = arith.constant 0 : i32
    %1 = arith.cmpi eq, %arg2, %c0_i32_0 : i32
    %2 = arith.andi %0, %1 : i1
    %3 = arith.extui %2 : i1 to i32
    %c0_i32_1 = arith.constant 0 : i32
    %4 = arith.cmpi ne, %3, %c0_i32_1 : i32
    scf.if %4 {
      %cst_10 = arith.constant 0xFF800000 : f32
      %17 = vector.broadcast %cst_10 : f32 to vector<16x1xf32>
      %c0_11 = arith.constant 0 : index
      %c0_12 = arith.constant 0 : index
      %18 = vector.load %arg7[%c0_11, %c0_12] : memref<16x1xf32, #tpu.memory_space<vmem>>, vector<16x1xf32>
      tpu.vector_store %arg7[%c0_11, %c0_12], %17 {strides = array<i32>} : memref<16x1xf32, #tpu.memory_space<vmem>>, vector<16x1xf32>,
      %cst_13 = arith.constant 0.000000e+00 : f32
      %19 = vector.broadcast %cst_13 : f32 to vector<16x1xf32>
      %c0_14 = arith.constant 0 : index
      %c0_15 = arith.constant 0 : index
      %20 = vector.load %arg8[%c0_14, %c0_15] : memref<16x1xf32, #tpu.memory_space<vmem>>, vector<16x1xf32>
      tpu.vector_store %arg8[%c0_14, %c0_15], %19 {strides = array<i32>} : memref<16x1xf32, #tpu.memory_space<vmem>>, vector<16x1xf32>,
    } else {
    }
    %c0 = arith.constant 0 : index
    %c0_2 = arith.constant 0 : index
    %5 = vector.load %arg3[%c0, %c0_2] : memref<16x32xbf16, #tpu.memory_space<vmem>>, vector<16x32xbf16>
    %c0_3 = arith.constant 0 : index
    %c0_4 = arith.constant 0 : index
    %6 = vector.load %arg4[%c0_3, %c0_4] : memref<32x128xbf16, #tpu.memory_space<vmem>>, vector<32x128xbf16>
    %cst = arith.constant dense<0.000000e+00> : vector<16x128xf32>
    %7 = tpu.matmul %5, %6, %cst {dimension_numbers = #tpu.dot_dimension_numbers<[1], [0], [0], [1], [0, 0, 1, 1], [], []>} : vector<16x32xbf16>, vector<32x128xbf16>, vector<16x128xf32> -> vector<16x128xf32>
    %c0_5 = arith.constant 0 : index
    %c0_6 = arith.constant 0 : index
    %8 = vector.load %arg5[%c0_5, %c0_6] : memref<1x128xf32, #tpu.memory_space<vmem>>, vector<1x128xf32>
    %9 = vector.broadcast %8 : vector<1x128xf32> to vector<16x128xf32>
    %10 = arith.addf %7, %9 : vector<16x128xf32>
    %c0_i32_7 = arith.constant 0 : i32
    %11 = arith.cmpi eq, %arg1, %c0_i32_7 : i32
    %12 = arith.extui %11 : i1 to i32
    %c0_i32_8 = arith.constant 0 : i32
    %13 = arith.cmpi ne, %12, %c0_i32_8 : i32
    scf.if %13 {
      %c0_10 = arith.constant 0 : index
      %c0_11 = arith.constant 0 : index
      %17 = vector.load %arg7[%c0_10, %c0_11] : memref<16x1xf32, #tpu.memory_space<vmem>>, vector<16x1xf32>
      %cst_12 = arith.constant dense<0xFF800000> : vector<16xf32>
      %18 = vector.multi_reduction <maximumf>, %10, %cst_12 [1] : vector<16x128xf32> to vector<16xf32>
      %19 = vector.shape_cast %18 : vector<16xf32> to vector<16x1xf32>
      %20 = arith.maximumf %17, %19 : vector<16x1xf32>
      %c0_13 = arith.constant 0 : index
      %c0_14 = arith.constant 0 : index
      %21 = vector.load %arg8[%c0_13, %c0_14] : memref<16x1xf32, #tpu.memory_space<vmem>>, vector<16x1xf32>
      %22 = arith.subf %17, %20 : vector<16x1xf32>
      %23 = math.exp %22 : vector<16x1xf32>
      %24 = arith.mulf %21, %23 : vector<16x1xf32>
      %25 = vector.broadcast %20 : vector<16x1xf32> to vector<16x128xf32>
      %26 = arith.subf %10, %25 : vector<16x128xf32>
      %27 = math.exp %26 : vector<16x128xf32>
      %cst_15 = arith.constant dense<0.000000e+00> : vector<16xf32>
      %28 = vector.multi_reduction <add>, %27, %cst_15 [1] : vector<16x128xf32> to vector<16xf32>
      %29 = vector.shape_cast %28 : vector<16xf32> to vector<16x1xf32>
      %30 = arith.addf %24, %29 : vector<16x1xf32>
      %c0_16 = arith.constant 0 : index
      %c0_17 = arith.constant 0 : index
      %31 = vector.load %arg8[%c0_16, %c0_17] : memref<16x1xf32, #tpu.memory_space<vmem>>, vector<16x1xf32>
      tpu.vector_store %arg8[%c0_16, %c0_17], %30 {strides = array<i32>} : memref<16x1xf32, #tpu.memory_space<vmem>>, vector<16x1xf32>,
      %c0_18 = arith.constant 0 : index
      %c0_19 = arith.constant 0 : index
      %32 = vector.load %arg7[%c0_18, %c0_19] : memref<16x1xf32, #tpu.memory_space<vmem>>, vector<16x1xf32>
      tpu.vector_store %arg7[%c0_18, %c0_19], %20 {strides = array<i32>} : memref<16x1xf32, #tpu.memory_space<vmem>>, vector<16x1xf32>,
    } else {
    }
    %c1_i32 = arith.constant 1 : i32
    %14 = arith.cmpi eq, %arg1, %c1_i32 : i32
    %15 = arith.extui %14 : i1 to i32
    %c0_i32_9 = arith.constant 0 : i32
    %16 = arith.cmpi ne, %15, %c0_i32_9 : i32
    scf.if %16 {
      %c0_10 = arith.constant 0 : index
      %c0_11 = arith.constant 0 : index
      %17 = vector.load %arg7[%c0_10, %c0_11] : memref<16x1xf32, #tpu.memory_space<vmem>>, vector<16x1xf32>
      %c0_12 = arith.constant 0 : index
      %c0_13 = arith.constant 0 : index
      %18 = vector.load %arg8[%c0_12, %c0_13] : memref<16x1xf32, #tpu.memory_space<vmem>>, vector<16x1xf32>
      %19 = math.log %18 : vector<16x1xf32>
      %20 = arith.addf %17, %19 : vector<16x1xf32>
      %21 = vector.broadcast %20 : vector<16x1xf32> to vector<16x128xf32>
      %22 = arith.subf %10, %21 : vector<16x128xf32>
      %c0_14 = arith.constant 0 : index
      %c0_15 = arith.constant 0 : index
      %23 = vector.load %arg6[%c0_14, %c0_15] : memref<16x128xf32, #tpu.memory_space<vmem>>, vector<16x128xf32>
      tpu.vector_store %arg6[%c0_14, %c0_15], %22 {strides = array<i32>} : memref<16x128xf32, #tpu.memory_space<vmem>>, vector<16x128xf32>,
    } else {
    }
    return
  }
  func.func @transform_0(%arg0: i32, %arg1: i32, %arg2: i32) -> (i32, i32) {
    %c0_i32 = arith.constant 0 : i32
    %c0_i32_0 = arith.constant 0 : i32
    return %arg0, %c0_i32 : i32, i32
  }
  func.func @transform_1(%arg0: i32, %arg1: i32, %arg2: i32) -> (i32, i32) {
    %c0_i32 = arith.constant 0 : i32
    %c0_i32_0 = arith.constant 0 : i32
    return %c0_i32, %arg2 : i32, i32
  }
  func.func @transform_2(%arg0: i32, %arg1: i32, %arg2: i32) -> (i32, i32) {
    %c0_i32 = arith.constant 0 : i32
    %c0_i32_0 = arith.constant 0 : i32
    return %c0_i32, %arg2 : i32, i32
  }
  func.func @transform_3(%arg0: i32, %arg1: i32, %arg2: i32) -> (i32, i32) {
    %0 = arith.muli %arg2, %arg1 : i32
    %c0_i32 = arith.constant 0 : i32
    return %arg0, %0 : i32, i32
  }
}

</mosaic_0001>

<llo_original>
// kernel: masked_language_model.1
$region0: #{masked_language_model.1}
  #allocation0 [shape = 'u32[]', space=smem, size = 0x4, offset = 0x4, fixed_abs, tag = 'smem constant byte address 0x4 - core index']
  #allocation1 [shape = 'u32[72,128]{1,0:T(1,128)}', space=vmem, size = 0x9000, scoped, tag = 'internal scratch']
  #allocation2 [shape = 'f32[16,1]{1,0:T(8,128)}', space=vmem, size = 0x2000, scoped, tag = 'scratch operand']
  #allocation3 [shape = 'f32[16,1]{1,0:T(8,128)}', space=vmem, size = 0x2000, scoped, tag = 'scratch operand']
  %s0 = inlined_call_operand.vmem [shape: bf16[16,32], index: 0, kind: input, shape index: {}]
  %s1 = inlined_call_operand.vmem [shape: bf16[32,128], index: 1, kind: input, shape index: {}]
  %s2 = inlined_call_operand.vmem [shape: f32[1,128], index: 2, kind: input, shape index: {}]
  %s3 = inlined_call_operand.hbm [shape: f32[16,128], index: 3, kind: output, shape index: {}]
  %s4 = sld [smem:[#allocation0]]
  $region57: #{masked_language_model.1} parent=0
    _
  %s6 = ssub.s32 1, %s4
  %s7 = scalar_select 0, %s6, %s4
  $region1: #{masked_language_model.1} parent=0
    #allocation4 [shape = 'u8[16384]{0}', space=vmem, size = 0x4000, scoped, tag = 'output window, operand 0']
    #allocation5 [shape = 's32[2]{0}', space=sflag, size = 0x8, scoped, tag = 'scoped memory for masked_language_model.1']
    %8 = vsyncpa [#allocation5], 0
    %s9 = scalar_lea.sflag [#allocation5], 1
    %10 = vsyncpa %s9, 0
    loop: start=0, step=1, limit=4
    $region2: #{masked_language_model.1} parent=1 // loop_pre_header
      _
    $region3: #{masked_language_model.1} parent=1 // loop_header
      %s12 = sphi 0, %s16
      %p13 = scmp.ge.s32.totalorder %s12, 4
      %s19 = sphi 0, %s38
      %s20 = sphi 0, %s34
      %s21 = sphi 0, %s30
      %s22 = sphi 0, %s19
      %s23 = sphi 0, %s20
      %s24 = sphi 0, %s21
      %s25 = sphi 0, %s22
      %s26 = sphi 0, %s23
      %s27 = sphi 0, %s24
      %s41 = sphi 0, %s43
      %s44 = sphi 0, %s41
      %s45 = sphi 0, %s44
      %s61 = sphi 0, %s45
      %s67 = sphi 0, %s69
      %s70 = sphi 0, %s67
      %s71 = sphi 0, %s70
      %s87 = sphi 0, %s71
      %s93 = sphi 0, %s95
      %s96 = sphi 0, %s93
      %s97 = sphi 0, %s96
      %s113 = sphi 0, %s97
      %s123 = sphi 0, %s125
      %s126 = sphi 0, %s123
      %s127 = sphi 0, %s126
      %s143 = sphi 0, %s127
    $region4: #{masked_language_model.1} parent=1 // loop_header_branch
      %15 = sbr.rel (%p13) target = $region8
    $region5: #{masked_language_model.1} parent=1 // loop_body
      %s17 = ssub.s32 %s12, 1
      %s18 = ssub.s32 %s12, 2
      %s28 = sadd.s32 1, %s21
      %p29 = scmp.ge.s32.totalorder %s28, 1
      %s30 = scalar_select %p29, 0, %s28
      %s31 = sadd.s32 1, %s20
      %s32 = scalar_select %p29, %s31, %s20
      %p33 = scmp.ge.s32.totalorder %s32, 2
      %s34 = scalar_select %p33, 0, %s32
      %s35 = sadd.s32 1, %s19
      %s36 = scalar_select %p33, %s35, %s19
      %p37 = scmp.ge.s32.totalorder %s36, 1
      %s38 = scalar_select %p37, 0, %s36
      %s39 = ssub.s32 %s19, %s38
      %p40 = scmp.eq.s32.totalorder %s39, 0
      %s42 = sadd.s32 %s41, 1
      %s43 = scalar_select %p40, %s41, %s42
      %p46 = pneg %p40
      %p47 = scmp.eq.s32.totalorder %s12, 1
      %p48 = por %p46, %p47
      %p49 = scmp.ne.s32.totalorder %s41, %s44
      %p50 = scmp.eq.s32.totalorder %s12, 0
      %p51 = por %p49, %p50
      %p52 = scmp.ne.s32.totalorder %s41, %s44
      %p53 = scmp.eq.s32.totalorder %s17, 1
      %p54 = por %p52, %p53
      %p55 = scmp.ne.s32.totalorder %s44, %s45
      %p56 = scmp.eq.s32.totalorder %s17, 0
      %p57 = por %p55, %p56
      %p58 = scmp.ne.s32.totalorder %s44, %s45
      %p59 = scmp.eq.s32.totalorder %s18, 1
      %p60 = por %p58, %p59
      %p62 = scmp.ne.s32.totalorder %s45, %s61
      %p63 = scmp.eq.s32.totalorder %s18, 0
      %p64 = por %p62, %p63
      %s65 = ssub.s32 %s21, %s30
      %p66 = scmp.eq.s32.totalorder %s65, 0
      %s68 = sadd.s32 %s67, 1
      %s69 = scalar_select %p66, %s67, %s68
      %p72 = pneg %p66
      %p73 = scmp.eq.s32.totalorder %s12, 1
      %p74 = por %p72, %p73
      %p75 = scmp.ne.s32.totalorder %s67, %s70
      %p76 = scmp.eq.s32.totalorder %s12, 0
      %p77 = por %p75, %p76
      %p78 = scmp.ne.s32.totalorder %s67, %s70
      %p79 = scmp.eq.s32.totalorder %s17, 1
      %p80 = por %p78, %p79
      %p81 = scmp.ne.s32.totalorder %s70, %s71
      %p82 = scmp.eq.s32.totalorder %s17, 0
      %p83 = por %p81, %p82
      %p84 = scmp.ne.s32.totalorder %s70, %s71
      %p85 = scmp.eq.s32.totalorder %s18, 1
      %p86 = por %p84, %p85
      %p88 = scmp.ne.s32.totalorder %s71, %s87
      %p89 = scmp.eq.s32.totalorder %s18, 0
      %p90 = por %p88, %p89
      %s91 = ssub.s32 %s21, %s30
      %p92 = scmp.eq.s32.totalorder %s91, 0
      %s94 = sadd.s32 %s93, 1
      %s95 = scalar_select %p92, %s93, %s94
      %p98 = pneg %p92
      %p99 = scmp.eq.s32.totalorder %s12, 1
      %p100 = por %p98, %p99
      %p101 = scmp.ne.s32.totalorder %s93, %s96
      %p102 = scmp.eq.s32.totalorder %s12, 0
      %p103 = por %p101, %p102
      %p104 = scmp.ne.s32.totalorder %s93, %s96
      %p105 = scmp.eq.s32.totalorder %s17, 1
      %p106 = por %p104, %p105
      %p107 = scmp.ne.s32.totalorder %s96, %s97
      %p108 = scmp.eq.s32.totalorder %s17, 0
      %p109 = por %p107, %p108
      %p110 = scmp.ne.s32.totalorder %s96, %s97
      %p111 = scmp.eq.s32.totalorder %s18, 1
      %p112 = por %p110, %p111
      %p114 = scmp.ne.s32.totalorder %s97, %s113
      %p115 = scmp.eq.s32.totalorder %s18, 0
      %p116 = por %p114, %p115
      %s117 = smul.u32 %s21, %s20
      %s118 = smul.u32 %s30, %s34
      %s119 = ssub.s32 %s19, %s38
      %s120 = ssub.s32 %s117, %s118
      %s121 = sor.u32 %s119, %s120
      %p122 = scmp.eq.s32.totalorder %s121, 0
      %s124 = sadd.s32 %s123, 1
      %s125 = scalar_select %p122, %s123, %s124
      %p128 = pneg %p122
      %p129 = scmp.eq.s32.totalorder %s12, 1
      %p130 = por %p128, %p129
      %p131 = scmp.ne.s32.totalorder %s123, %s126
      %p132 = scmp.eq.s32.totalorder %s12, 0
      %p133 = por %p131, %p132
      %p134 = scmp.ne.s32.totalorder %s123, %s126
      %p135 = scmp.eq.s32.totalorder %s17, 1
      %p136 = por %p134, %p135
      %p137 = scmp.ne.s32.totalorder %s126, %s127
      %p138 = scmp.eq.s32.totalorder %s17, 0
      %p139 = por %p137, %p138
      %p140 = scmp.ne.s32.totalorder %s126, %s127
      %p141 = scmp.eq.s32.totalorder %s18, 1
      %p142 = por %p140, %p141
      %p144 = scmp.ne.s32.totalorder %s127, %s143
      %p145 = scmp.eq.s32.totalorder %s18, 0
      %p146 = por %p144, %p145
      %p147 = scmp.le.s32.totalorder 1, %s12
      %p148 = scmp.lt.s32.totalorder %s12, 3
      %p149 = pnand %p147, %p148
      %p150 = pneg %p149
      // Predicated region
      $region9: #{masked_language_model.1} parent=5 // pred_check
        _
      $region10: #{masked_language_model.1} parent=5 // pred_check_branch
        %152 = sbr.rel (%p149) target = $region12
      $region11: #{masked_language_model.1} parent=5 // pred_region
        %s153 = ssub.s32 %s12, 1
        // Predicated region
        $region13: #{masked_language_model.1} parent=11 // pred_check
          %p154 = pneg %p57
        $region14: #{masked_language_model.1} parent=11 // pred_check_branch
          %156 = sbr.rel (%p154) target = $region16
        $region15: #{masked_language_model.1} parent=11 // pred_region
          %s157 = smul.u32 2, %s22
          %p158 = scmp.lt.s32.totalorder %s157, 1
          %s159 = scalar_select %p158, %s157, 1
          %s160 = smul.addr %s159, 4
          %s161 = scalar_lea.vmem %s0, %s160
          %s162 = smul.u32 2, %s22
        $region16: #{masked_language_model.1} parent=11 // pred_fallthru
          _
        // Predicated region
        $region17: #{masked_language_model.1} parent=11 // pred_check
          %p163 = pneg %p83
        $region18: #{masked_language_model.1} parent=11 // pred_check_branch
          %165 = sbr.rel (%p163) target = $region20
        $region19: #{masked_language_model.1} parent=11 // pred_region
          %p166 = scmp.lt.s32.totalorder %s24, 0
          %s167 = scalar_select %p166, %s24, 0
          %s168 = smul.addr %s167, 4
          %s169 = scalar_lea.vmem %s1, %s168
        $region20: #{masked_language_model.1} parent=11 // pred_fallthru
          _
        // Predicated region
        $region21: #{masked_language_model.1} parent=11 // pred_check
          %p170 = pneg %p109
        $region22: #{masked_language_model.1} parent=11 // pred_check_branch
          %172 = sbr.rel (%p170) target = $region24
        $region23: #{masked_language_model.1} parent=11 // pred_region
          %p173 = scmp.lt.s32.totalorder %s24, 0
          %s174 = scalar_select %p173, %s24, 0
          %s175 = scalar_lea.vmem %s2, %s174
        $region24: #{masked_language_model.1} parent=11 // pred_fallthru
          _
      $region12: #{masked_language_model.1} parent=5 // pred_fallthru
        _
      %p176 = scmp.lt.s32.totalorder %s12, 2
      // Predicated region
      $region25: #{masked_language_model.1} parent=5 // pred_check
        %p177 = pneg %p176
      $region26: #{masked_language_model.1} parent=5 // pred_check_branch
        %179 = sbr.rel (%p177) target = $region28
      $region27: #{masked_language_model.1} parent=5 // pred_region
        _
      $region28: #{masked_language_model.1} parent=5 // pred_fallthru
        _
      %p180 = scmp.le.s32.totalorder 1, %s12
      %p181 = scmp.lt.s32.totalorder %s12, 3
      %p182 = pnand %p180, %p181
      %p183 = pneg %p182
      // Predicated region
      $region29: #{masked_language_model.1} parent=5 // pred_check
        _
      $region30: #{masked_language_model.1} parent=5 // pred_check_branch
        %185 = sbr.rel (%p182) target = $region32
      $region31: #{masked_language_model.1} parent=5 // pred_region
        %s186 = ssub.s32 %s12, 1
        %s187 = smul.u32 2, %s22
        %p188 = scmp.lt.s32.totalorder %s187, 1
        %s189 = scalar_select %p188, %s187, 1
        %s190 = smul.addr %s189, 4
        %s191 = scalar_lea.vmem %s0, %s190
        %p192 = pneg %p57
        %p193 = pneg %p54
        %p194 = scmp.lt.s32.totalorder %s24, 0
        %s195 = scalar_select %p194, %s24, 0
        %s196 = smul.addr %s195, 4
        %s197 = scalar_lea.vmem %s1, %s196
        %p198 = pneg %p83
        %p199 = pneg %p80
        %p200 = scmp.lt.s32.totalorder %s24, 0
        %s201 = scalar_select %p200, %s24, 0
        %s202 = scalar_lea.vmem %s2, %s201
        %p203 = pneg %p109
        %p204 = pneg %p106
        %p205 = pneg %p139
        %p206 = pneg %p136
        %s207 = sand.u32 %s126, 1
        %s208 = scalar_lea.sflag [#allocation5], %s207
        %s209 = sand.u32 %s126, 1
        %s210 = smul.addr %s209, 16
        %s211 = scalar_lea.vmem [#allocation4], %s210
        %s212 = smul.u32 2, %s22
        %p213 = scmp.lt.s32.totalorder %s212, 1
        %s214 = scalar_select %p213, %s212, 1
        %s215 = smul.addr %s214, 4
        %s216 = scalar_lea.vmem %s0, %s215
        %s217 = smul.u32 2, %s22
        %p218 = scmp.lt.s32.totalorder %s24, 0
        %s219 = scalar_select %p218, %s24, 0
        %s220 = smul.addr %s219, 4
        %s221 = scalar_lea.vmem %s1, %s220
        %p222 = scmp.lt.s32.totalorder %s24, 0
        %s223 = scalar_select %p222, %s24, 0
        %s224 = scalar_lea.vmem %s2, %s223
        %s225 = smul.u32 %s24, %s23
        %s226 = smul.u32 2, %s22
        %p228 = scmp.eq.s32.totalorder %s23, 0
        %p229 = scmp.eq.s32.totalorder %s24, 0
        %p230 = pnand %p228, %p229
        %p231 = pneg %p230
        // Predicated region
        $region33: #{masked_language_model.1} parent=31 // pred_check
          _
        $region34: #{masked_language_model.1} parent=31 // pred_check_branch
          %233 = sbr.rel (%p230) target = $region36
        $region35: #{masked_language_model.1} parent=31 // pred_region
          %vm234 = vcmask 7168
          %235 = vst.msk [vmem:[#allocation2] sm:$0xff] %vm234, -inf
          %236 = vst.msk [vmem:[#allocation2 + $0x8] sm:$0xff] %vm234, -inf
          %237 = vst.msk [vmem:[#allocation3] sm:$0xff] %vm234, 0.0
          %238 = vst.msk [vmem:[#allocation3 + $0x8] sm:$0xff] %vm234, 0.0
        $region36: #{masked_language_model.1} parent=31 // pred_fallthru
          _
        %v239 = vld [vmem:[%s216] sm:$0xf]
        %v240 = vld [vmem:[%s216 + $0x4] sm:$0xf]
        %v241 = vld [vmem:[%s221] sm:$0xf]
        %v242 = vld [vmem:[%s221 + $0x4] sm:$0xf]
        %v243 = vld [vmem:[%s221 + $0x8] sm:$0xf]
        %v244 = vld [vmem:[%s221 + $0xc] sm:$0xf]
        %v245 = vld [vmem:[%s224] sm:$0x1]
        %v247 = vperm.slane %v245, 0
        %v251 = vunpack.c.l.b16 %v239
        %v252 = vunpack.c.l.b16 %v240
        %v253 = vpack.c.b16 %v252, %v251
        %v258 = vunpack.c.l.b16 %v241
        %v259 = vunpack.c.l.b16 %v242
        %v260 = vunpack.c.l.b16 %v243
        %v261 = vunpack.c.l.b16 %v244
        %v262 = vpack.c.b16 %v259, %v258
        %v263 = vpack.c.b16 %v261, %v260
        %vm266 = vcmask 261120
        %v268 = vsel %vm266, %v253, 0
        %270 = vmatpush.bf16.msra.mxu0 0
        %271 = vmatpush.bf16.msra.mxu0 0
        %272 = vmatpush.bf16.msra.mxu0 0
        %273 = vmatpush.bf16.msra.mxu0 0
        %274 = vmatpush.bf16.msra.mxu0 0
        %275 = vmatpush.bf16.msra.mxu0 0
        %276 = vmatpush.bf16.msra.mxu0 %v263
        %277 = vmatpush.bf16.msra.mxu0 %v262
        %278 = vmatmul.bf16.gmra.mxu0 %v268
        %v279 = vpop.f32.mrf.mxu0
        %v280 = vadd.f32 %v247, %v279
        %v281 = vpop.f32.mrf.mxu0
        %v282 = vadd.f32 %v247, %v281
        %283 = vdwg.mxu0
        // Predicated region
        $region37: #{masked_language_model.1} parent=31 // pred_check
          %p284 = pneg %p228
        $region38: #{masked_language_model.1} parent=31 // pred_check_branch
          %286 = sbr.rel (%p284) target = $region40
        $region39: #{masked_language_model.1} parent=31 // pred_region
          %v287 = vld [vmem:[#allocation2] sm:$0xff]
          %v288 = vld [vmem:[#allocation2 + $0x8] sm:$0xff]
          %289 = vmax.xlane.f32.xlu0 %v280
          %v290 = vpop.xlane.xlu0 %289
          %291 = vmax.xlane.f32.xlu0 %v282
          %v292 = vpop.xlane.xlu0 %291
          %v293 = vmax.f32 %v287, %v290
          %v294 = vmax.f32 %v288, %v292
          %v295 = vld [vmem:[#allocation3] sm:$0xff]
          %v296 = vld [vmem:[#allocation3 + $0x8] sm:$0xff]
          %v297 = vsub.f32 %v287, %v293
          %v298 = vsub.f32 %v288, %v294
          %v299 = vmul.f32 %v297, 1.442695
          %v300 = vpow.pop %v299
          %v301 = vmul.f32 %v298, 1.442695
          %v302 = vpow.pop %v301
          %v303 = vmul.f32 %v295, %v300
          %v304 = vmul.f32 %v296, %v302
          %306 = vset.pattern.permute.xlu0 0
          %307 = vperm.xlu0 %306, %v293
          %v308 = vpop.permute.xlu0 %307
          %311 = vset.pattern.permute.xlu0 0
          %312 = vperm.xlu0 %311, %v294
          %v313 = vpop.permute.xlu0 %312
          %v315 = vsub.f32 %v280, %v308
          %v316 = vsub.f32 %v282, %v313
          %v317 = vmul.f32 %v315, 1.442695
          %v318 = vpow.pop %v317
          %v319 = vmul.f32 %v316, 1.442695
          %v320 = vpow.pop %v319
          %321 = vadd.xlane.f32.xlu0 %v318
          %v322 = vpop.xlane.xlu0 %321
          %323 = vadd.xlane.f32.xlu0 %v320
          %v324 = vpop.xlane.xlu0 %323
          %v325 = vadd.f32 %v303, %v322
          %v326 = vadd.f32 %v304, %v324
          %vm327 = vcmask 7168
          %328 = vst.msk [vmem:[#allocation3] sm:$0xff] %vm327, %v325
          %329 = vst.msk [vmem:[#allocation3 + $0x8] sm:$0xff] %vm327, %v326
          %330 = vst.msk [vmem:[#allocation2] sm:$0xff] %vm327, %v293
          %331 = vst.msk [vmem:[#allocation2 + $0x8] sm:$0xff] %vm327, %v294
        $region40: #{masked_language_model.1} parent=31 // pred_fallthru
          _
        %p332 = scmp.eq.s32.totalorder %s23, 1
        // Predicated region
        $region41: #{masked_language_model.1} parent=31 // pred_check
          %p333 = pneg %p332
        $region42: #{masked_language_model.1} parent=31 // pred_check_branch
          %335 = sbr.rel (%p333) target = $region44
        $region43: #{masked_language_model.1} parent=31 // pred_region
          %v336 = vld [vmem:[#allocation2] sm:$0xff]
          %v337 = vld [vmem:[#allocation2 + $0x8] sm:$0xff]
          %v338 = vld [vmem:[#allocation3] sm:$0xff]
          %v339 = vld [vmem:[#allocation3 + $0x8] sm:$0xff]
          %v340 = vlog2.pop %v338
          %v341 = vmul.f32 %v340, 0.6931472
          %v342 = vlog2.pop %v339
          %v343 = vmul.f32 %v342, 0.6931472
          %v344 = vadd.f32 %v336, %v341
          %v345 = vadd.f32 %v337, %v343
          %347 = vset.pattern.permute.xlu0 0
          %348 = vperm.xlu0 %347, %v344
          %v349 = vpop.permute.xlu0 %348
          %352 = vset.pattern.permute.xlu0 0
          %353 = vperm.xlu0 %352, %v345
          %v354 = vpop.permute.xlu0 %353
          %v356 = vsub.f32 %v280, %v349
          %v357 = vsub.f32 %v282, %v354
          %358 = vst [vmem:[%s211] sm:$0xff] %v356
          %359 = vst [vmem:[%s211 + $0x8] sm:$0xff] %v357
        $region44: #{masked_language_model.1} parent=31 // pred_fallthru
          _
        %s360 = sand.u32 %s126, 1
        %s361 = scalar_lea.sflag [#allocation5], %s360
        %s362 = sand.u32 %s126, 1
        %s363 = smul.addr %s362, 16
        %s364 = scalar_lea.vmem [#allocation4], %s363
        // Predicated region
        $region45: #{masked_language_model.1} parent=31 // pred_check
          %p365 = pneg %p136
        $region46: #{masked_language_model.1} parent=31 // pred_check_branch
          %367 = sbr.rel (%p365) target = $region48
        $region47: #{masked_language_model.1} parent=31 // pred_region
          %s368 = smul.u32 %s24, %s23
          %s369 = smul.u32 2, %s22
          %371 = vsyncadd %s361, 0
          %s372 = sadd.s32 %s368, %s369
          %s373 = smul.addr %s372, 8
          %s374 = scalar_lea.hbm %s3, %s373
          %s375 = sshll.u32 %s364, 4
          %s376 = int_to_ptr.vmem [resolvable:$true] %s375
          %s377 = sshll.u32 %s374, 4
          %s378 = int_to_ptr.hbm [resolvable:$true] %s377
          %383 = dma.vmem_to_hbm [thread:$0]  %s376, 256, %s378, %s361, 128, 128, 8
        $region48: #{masked_language_model.1} parent=31 // pred_fallthru
          _
      $region32: #{masked_language_model.1} parent=5 // pred_fallthru
        _
      %p384 = scmp.le.s32.totalorder 2, %s12
      // Predicated region
      $region49: #{masked_language_model.1} parent=5 // pred_check
        %p385 = pneg %p384
      $region50: #{masked_language_model.1} parent=5 // pred_check_branch
        %387 = sbr.rel (%p385) target = $region52
      $region51: #{masked_language_model.1} parent=5 // pred_region
        %s388 = ssub.s32 %s12, 2
        // Predicated region
        $region53: #{masked_language_model.1} parent=51 // pred_check
          %p389 = pneg %p142
        $region54: #{masked_language_model.1} parent=51 // pred_check_branch
          %391 = sbr.rel (%p389) target = $region56
        $region55: #{masked_language_model.1} parent=51 // pred_region
          %s392 = sand.u32 %s127, 1
          %s393 = scalar_lea.sflag [#allocation5], %s392
          %s394 = sand.u32 %s127, 1
          %s395 = smul.addr %s394, 16
          %s396 = scalar_lea.vmem [#allocation4], %s395
          %398 = dma.done %s393, 256
        $region56: #{masked_language_model.1} parent=51 // pred_fallthru
          _
      $region52: #{masked_language_model.1} parent=5 // pred_fallthru
        _
    $region6: #{masked_language_model.1} parent=1 // loop_footer
      %s16 = sadd.s32 1, %s12
    $region7: #{masked_language_model.1} parent=1 // loop_footer_branch
      %11 = sbr.rel target = $region3
    $region8: #{masked_language_model.1} parent=1 // loop_exit
      _
    %399 = vsyncpa [#allocation5], 1
    %s400 = scalar_lea.sflag [#allocation5], 1
    %401 = vsyncpa %s400, 1

</llo_original>
